<compile_context>
chip_gen: v7x
topology: tpu7x:2x2x1
jax: 0.10.0
libtpu: 0.0.40
codegen_flags: <defaults>
</compile_context>

<pallas_src>
import jax
import jax.numpy as jnp
from jax.experimental import pallas as pl
from jax.experimental.pallas import tpu as pltpu


def _round_up(x, m):
    return (x + m - 1) // m * m


def _vfe_kernel(x_ref, w_ref, shift_ref, o_ref):
    # x_ref:     (tm, Cin)   bf16 tile of input point features
    # w_ref:     (Cin, Cout) bf16 transposed linear weight with BN scale folded in
    # shift_ref: (1, Cout)   f32 folded BN shift = beta - mean * gamma / sqrt(var + eps)
    # o_ref:     (tm, Cout)  f32 output tile
    y = jnp.dot(x_ref[...], w_ref[...], preferred_element_type=jnp.float32)
    y = y + shift_ref[...]
    o_ref[...] = jnp.maximum(y, 0.0).astype(o_ref.dtype)


def dynamic_vfe_layer(inputs, weight, gamma, beta, running_mean, running_var,
                      eps=1e-3, tm=2048):
    """Pallas implementation of DynamicVFELayer.forward (eval-mode BN).

    Args:
        inputs:       (M, Cin)  point/voxel features.
        weight:       (Cout, Cin)  nn.Linear weight (bias=False).
        gamma, beta, running_mean, running_var: (Cout,) BN1d params/stats.
        eps:          BN epsilon (module config uses 1e-3).
        tm:           M-axis tile size (rows of points per grid step).
    Returns:
        (M, Cout) float32 point features.
    """
    M, Cin = inputs.shape
    Cout = weight.shape[0]

    # Fold eval-mode BN into a per-output-channel scale/shift.
    inv_std = 1.0 / jnp.sqrt(running_var.astype(jnp.float32) + eps)
    scale = gamma.astype(jnp.float32) * inv_std                                  # (Cout,)
    shift = (beta.astype(jnp.float32)
             - running_mean.astype(jnp.float32) * scale).reshape(1, Cout)        # (1, Cout)

    # Fold the scale directly into the (transposed) linear weight (Linear has no bias),
    # then cast matmul operands to bf16 (auto_fp16 semantics), accumulate f32 on MXU.
    w_t = (weight.T.astype(jnp.float32) * scale[None, :]).astype(jnp.bfloat16)   # (Cin, Cout)
    x = inputs.astype(jnp.bfloat16)

    # Ragged M: shrink the tile for tiny inputs, pad rows up to a tile multiple,
    # slice the padding off after the call.
    tm_eff = min(tm, _round_up(max(M, 8), 8))
    M_pad = _round_up(M, tm_eff)
    if M_pad != M:
        x = jnp.pad(x, ((0, M_pad - M), (0, 0)))

    grid = (M_pad // tm_eff,)
    out = pl.pallas_call(
        _vfe_kernel,
        out_shape=jax.ShapeDtypeStruct((M_pad, Cout), jnp.float32),
        grid_spec=pltpu.PrefetchScalarGridSpec(
            num_scalar_prefetch=0,
            grid=grid,
            in_specs=[
                pl.BlockSpec((tm_eff, Cin), lambda i: (i, 0)),
                pl.BlockSpec((Cin, Cout), lambda i: (0, 0)),
                pl.BlockSpec((1, Cout), lambda i: (0, 0)),
            ],
            out_specs=pl.BlockSpec((tm_eff, Cout), lambda i: (i, 0)),
        ),
        compiler_params=pltpu.CompilerParams(
            dimension_semantics=("parallel",),
            vmem_limit_bytes=32 * 1024 * 1024,
        ),
    )(x, w_t, shift)

    return out[:M] if M_pad != M else out


if __name__ == "__main__":
    # Small shapes consistent with the module: M points (deliberately ragged), Cin -> Cout.
    M, Cin, Cout = 300, 32, 64
    key = jax.random.PRNGKey(0)
    k_x, k_w, k_g, k_b, k_m, k_v = jax.random.split(key, 6)

    inputs = jax.random.normal(k_x, (M, Cin), dtype=jnp.float32)
    # nn.Linear(in, out, bias=False): weight stored as (Cout, Cin).
    weight = jax.random.normal(k_w, (Cout, Cin), dtype=jnp.float32) * 0.1
    gamma = 1.0 + 0.1 * jax.random.normal(k_g, (Cout,), dtype=jnp.float32)
    beta = 0.1 * jax.random.normal(k_b, (Cout,), dtype=jnp.float32)
    running_mean = 0.1 * jax.random.normal(k_m, (Cout,), dtype=jnp.float32)
    running_var = jnp.abs(1.0 + 0.1 * jax.random.normal(k_v, (Cout,), dtype=jnp.float32))

    out = dynamic_vfe_layer(inputs, weight, gamma, beta, running_mean, running_var)
    out = jax.block_until_ready(out)

    # Pure-JAX f32 reference (eval-mode BN). Loosened tolerance reflects the intentional
    # bf16 matmul operands (auto_fp16) — expected mixed-precision deviation, not a bug.
    ref = inputs @ weight.T
    ref = (ref - running_mean) / jnp.sqrt(running_var + 1e-3) * gamma + beta
    ref = jnp.maximum(ref, 0.0)
    assert out.shape == (M, Cout) and out.dtype == jnp.float32
    assert jnp.allclose(out, ref, atol=3e-2, rtol=3e-2), "mismatch vs reference"

    print("KERNEL_OK")
</pallas_src>

<mosaic_0001>
module attributes {stable_mosaic.version = 11 : i64} {
  func.func @_vfe_kernel(%arg0: i32, %arg1: memref<304x32xbf16, #tpu.memory_space<vmem>>, %arg2: memref<32x64xbf16, #tpu.memory_space<vmem>>, %arg3: memref<1x64xf32, #tpu.memory_space<vmem>>, %arg4: memref<304x64xf32, #tpu.memory_space<vmem>>) attributes {dimension_semantics = [#tpu.dimension_semantics<parallel>], iteration_bounds = array<i64: 1>, scalar_prefetch = 0 : i64, scratch_operands = 0 : i64, tpu.core_type = #tpu.core_type<tc>, window_params = [{transform_indices = @transform_0, window_bounds = array<i64: 304, 32>}, {pipeline_mode = #tpu.pipeline_mode<synchronous>, transform_indices = @transform_1, window_bounds = array<i64: 32, 64>}, {pipeline_mode = #tpu.pipeline_mode<synchronous>, transform_indices = @transform_2, window_bounds = array<i64: 1, 64>}, {transform_indices = @transform_3, window_bounds = array<i64: 304, 64>}]} {
    %c0 = arith.constant 0 : index
    %c0_0 = arith.constant 0 : index
    %0 = vector.load %arg1[%c0, %c0_0] : memref<304x32xbf16, #tpu.memory_space<vmem>>, vector<304x32xbf16>
    %c0_1 = arith.constant 0 : index
    %c0_2 = arith.constant 0 : index
    %1 = vector.load %arg2[%c0_1, %c0_2] : memref<32x64xbf16, #tpu.memory_space<vmem>>, vector<32x64xbf16>
    %cst = arith.constant dense<0.000000e+00> : vector<304x64xf32>
    %2 = tpu.matmul %0, %1, %cst {dimension_numbers = #tpu.dot_dimension_numbers<[1], [0], [0], [1], [0, 0, 1, 1], [], []>} : vector<304x32xbf16>, vector<32x64xbf16>, vector<304x64xf32> -> vector<304x64xf32>
    %c0_3 = arith.constant 0 : index
    %c0_4 = arith.constant 0 : index
    %3 = vector.load %arg3[%c0_3, %c0_4] : memref<1x64xf32, #tpu.memory_space<vmem>>, vector<1x64xf32>
    %4 = vector.broadcast %3 : vector<1x64xf32> to vector<304x64xf32>
    %5 = arith.addf %2, %4 : vector<304x64xf32>
    %cst_5 = arith.constant 0.000000e+00 : f32
    %6 = vector.broadcast %cst_5 : f32 to vector<304x64xf32>
    %7 = arith.maximumf %5, %6 : vector<304x64xf32>
    %c0_6 = arith.constant 0 : index
    %c0_7 = arith.constant 0 : index
    %8 = vector.load %arg4[%c0_6, %c0_7] : memref<304x64xf32, #tpu.memory_space<vmem>>, vector<304x64xf32>
    tpu.vector_store %arg4[%c0_6, %c0_7], %7 {strides = array<i32>} : memref<304x64xf32, #tpu.memory_space<vmem>>, vector<304x64xf32>,
    return
  }
  func.func @transform_0(%arg0: i32) -> (i32, i32) {
    %c0_i32 = arith.constant 0 : i32
    %c0_i32_0 = arith.constant 0 : i32
    return %arg0, %c0_i32 : i32, i32
  }
  func.func @transform_1(%arg0: i32) -> (i32, i32) {
    %c0_i32 = arith.constant 0 : i32
    %c0_i32_0 = arith.constant 0 : i32
    %c0_i32_1 = arith.constant 0 : i32
    return %c0_i32, %c0_i32_0 : i32, i32
  }
  func.func @transform_2(%arg0: i32) -> (i32, i32) {
    %c0_i32 = arith.constant 0 : i32
    %c0_i32_0 = arith.constant 0 : i32
    %c0_i32_1 = arith.constant 0 : i32
    return %c0_i32, %c0_i32_0 : i32, i32
  }
  func.func @transform_3(%arg0: i32) -> (i32, i32) {
    %c0_i32 = arith.constant 0 : i32
    %c0_i32_0 = arith.constant 0 : i32
    return %arg0, %c0_i32 : i32, i32
  }
}

</mosaic_0001>

<llo_original>
// kernel: tpu_custom_call.1
$region0: #{tpu_custom_call.1}
  #allocation0 [shape = 'u32[]', space=smem, size = 0x4, offset = 0x4, fixed_abs, tag = 'smem constant byte address 0x4 - core index']
  #allocation1 [shape = 'u32[144,128]{1,0:T(1,128)}', space=vmem, size = 0x12000, scoped, tag = 'internal scratch']
  %s0 = inlined_call_operand.vmem [shape: bf16[304,32], index: 0, kind: input, shape index: {}]
  %s1 = inlined_call_operand.vmem [shape: bf16[32,64], index: 1, kind: input, shape index: {}]
  %s2 = inlined_call_operand.vmem [shape: f32[1,64], index: 2, kind: input, shape index: {}]
  %s3 = inlined_call_operand.vmem [shape: f32[304,64], index: 3, kind: output, shape index: {}]
  %s4 = sld [smem:[#allocation0]]
  $region22: #{tpu_custom_call.1} parent=0
    _
  %s6 = ssub.s32 1, %s4
  %s7 = scalar_select 0, %s6, %s4
  // Predicated region
  $region2: #{tpu_custom_call.1} parent=0 // pred_check
    _
  $region3: #{tpu_custom_call.1} parent=0 // pred_check_branch
    %9 = sbr.rel (0) target = $region5
  $region4: #{tpu_custom_call.1} parent=0 // pred_region
    _
  $region5: #{tpu_custom_call.1} parent=0 // pred_fallthru
    _
  // Predicated region
  $region6: #{tpu_custom_call.1} parent=0 // pred_check
    _
  $region7: #{tpu_custom_call.1} parent=0 // pred_check_branch
    %11 = sbr.rel (0) target = $region9
  $region8: #{tpu_custom_call.1} parent=0 // pred_region
    _
  $region9: #{tpu_custom_call.1} parent=0 // pred_fallthru
    _
  // Predicated region
  $region10: #{tpu_custom_call.1} parent=0 // pred_check
    _
  $region11: #{tpu_custom_call.1} parent=0 // pred_check_branch
    %13 = sbr.rel (0) target = $region13
  $region12: #{tpu_custom_call.1} parent=0 // pred_region
    _
  $region13: #{tpu_custom_call.1} parent=0 // pred_fallthru
    _
  %v15 = vld [vmem:[%s0] sm:$0xf]
  %v16 = vld [vmem:[%s0 + $0x4] sm:$0xf]
  %v17 = vld [vmem:[%s0 + $0x8] sm:$0xf]
  %v18 = vld [vmem:[%s0 + $0xc] sm:$0xf]
  %v19 = vld [vmem:[%s0 + $0x10] sm:$0xf]
  %v20 = vld [vmem:[%s0 + $0x14] sm:$0xf]
  %v21 = vld [vmem:[%s0 + $0x18] sm:$0xf]
  %v22 = vld [vmem:[%s0 + $0x1c] sm:$0xf]
  %v23 = vld [vmem:[%s0 + $0x20] sm:$0xf]
  %v24 = vld [vmem:[%s0 + $0x24] sm:$0xf]
  %v25 = vld [vmem:[%s0 + $0x28] sm:$0xf]
  %v26 = vld [vmem:[%s0 + $0x2c] sm:$0xf]
  %v27 = vld [vmem:[%s0 + $0x30] sm:$0xf]
  %v28 = vld [vmem:[%s0 + $0x34] sm:$0xf]
  %v29 = vld [vmem:[%s0 + $0x38] sm:$0xf]
  %v30 = vld [vmem:[%s0 + $0x3c] sm:$0xf]
  %v31 = vld [vmem:[%s0 + $0x40] sm:$0xf]
  %v32 = vld [vmem:[%s0 + $0x44] sm:$0xf]
  %v33 = vld [vmem:[%s0 + $0x48] sm:$0xf]
  %v34 = vld [vmem:[%s0 + $0x4c] sm:$0xf]
  %v35 = vld [vmem:[%s0 + $0x50] sm:$0xf]
  %v36 = vld [vmem:[%s0 + $0x54] sm:$0xf]
  %v37 = vld [vmem:[%s0 + $0x58] sm:$0xf]
  %v38 = vld [vmem:[%s0 + $0x5c] sm:$0xf]
  %v39 = vld [vmem:[%s0 + $0x60] sm:$0xf]
  %v40 = vld [vmem:[%s0 + $0x64] sm:$0xf]
  %v41 = vld [vmem:[%s0 + $0x68] sm:$0xf]
  %v42 = vld [vmem:[%s0 + $0x6c] sm:$0xf]
  %v43 = vld [vmem:[%s0 + $0x70] sm:$0xf]
  %v44 = vld [vmem:[%s0 + $0x74] sm:$0xf]
  %v45 = vld [vmem:[%s0 + $0x78] sm:$0xf]
  %v46 = vld [vmem:[%s0 + $0x7c] sm:$0xf]
  %v47 = vld [vmem:[%s0 + $0x80] sm:$0xf]
  %v48 = vld [vmem:[%s0 + $0x84] sm:$0xf]
  %v49 = vld [vmem:[%s0 + $0x88] sm:$0xf]
  %v50 = vld [vmem:[%s0 + $0x8c] sm:$0xf]
  %v51 = vld [vmem:[%s0 + $0x90] sm:$0xf]
  %v52 = vld [vmem:[%s0 + $0x94] sm:$0xf]
  %v53 = vld [vmem:[%s1] sm:$0xf]
  %v54 = vld [vmem:[%s1 + $0x4] sm:$0xf]
  %v55 = vld [vmem:[%s1 + $0x8] sm:$0xf]
  %v56 = vld [vmem:[%s1 + $0xc] sm:$0xf]
  %v57 = vld [vmem:[%s2] sm:$0x1]
  %v59 = vlaneseq
  %v60 = vshrl.u32 %v59, 7
  %v61 = vsub.s32 0, %v60
  %v62 = vrot.slane %v57, %v61
  %v102 = vunpack.c.l.b16 %v15
  %v103 = vunpack.c.l.b16 %v16
  %v104 = vunpack.c.l.b16 %v17
  %v105 = vunpack.c.l.b16 %v18
  %v106 = vunpack.c.l.b16 %v19
  %v107 = vunpack.c.l.b16 %v20
  %v108 = vunpack.c.l.b16 %v21
  %v109 = vunpack.c.l.b16 %v22
  %v110 = vunpack.c.l.b16 %v23
  %v111 = vunpack.c.l.b16 %v24
  %v112 = vunpack.c.l.b16 %v25
  %v113 = vunpack.c.l.b16 %v26
  %v114 = vunpack.c.l.b16 %v27
  %v115 = vunpack.c.l.b16 %v28
  %v116 = vunpack.c.l.b16 %v29
  %v117 = vunpack.c.l.b16 %v30
  %v118 = vunpack.c.l.b16 %v31
  %v119 = vunpack.c.l.b16 %v32
  %v120 = vunpack.c.l.b16 %v33
  %v121 = vunpack.c.l.b16 %v34
  %v122 = vunpack.c.l.b16 %v35
  %v123 = vunpack.c.l.b16 %v36
  %v124 = vunpack.c.l.b16 %v37
  %v125 = vunpack.c.l.b16 %v38
  %v126 = vunpack.c.l.b16 %v39
  %v127 = vunpack.c.l.b16 %v40
  %v128 = vunpack.c.l.b16 %v41
  %v129 = vunpack.c.l.b16 %v42
  %v130 = vunpack.c.l.b16 %v43
  %v131 = vunpack.c.l.b16 %v44
  %v132 = vunpack.c.l.b16 %v45
  %v133 = vunpack.c.l.b16 %v46
  %v134 = vunpack.c.l.b16 %v47
  %v135 = vunpack.c.l.b16 %v48
  %v136 = vunpack.c.l.b16 %v49
  %v137 = vunpack.c.l.b16 %v50
  %v138 = vunpack.c.l.b16 %v51
  %v139 = vunpack.c.l.b16 %v52
  %v140 = vpack.c.b16 %v103, %v102
  %v141 = vpack.c.b16 %v105, %v104
  %v142 = vpack.c.b16 %v107, %v106
  %v143 = vpack.c.b16 %v109, %v108
  %v144 = vpack.c.b16 %v111, %v110
  %v145 = vpack.c.b16 %v113, %v112
  %v146 = vpack.c.b16 %v115, %v114
  %v147 = vpack.c.b16 %v117, %v116
  %v148 = vpack.c.b16 %v119, %v118
  %v149 = vpack.c.b16 %v121, %v120
  %v150 = vpack.c.b16 %v123, %v122
  %v151 = vpack.c.b16 %v125, %v124
  %v152 = vpack.c.b16 %v127, %v126
  %v153 = vpack.c.b16 %v129, %v128
  %v154 = vpack.c.b16 %v131, %v130
  %v155 = vpack.c.b16 %v133, %v132
  %v156 = vpack.c.b16 %v135, %v134
  %v157 = vpack.c.b16 %v137, %v136
  %v158 = vpack.c.b16 %v139, %v138
  %v163 = vunpack.c.l.b16 %v53
  %v164 = vunpack.c.l.b16 %v54
  %v165 = vunpack.c.l.b16 %v55
  %v166 = vunpack.c.l.b16 %v56
  %v167 = vpack.c.b16 %v164, %v163
  %v168 = vpack.c.b16 %v166, %v165
  %vm171 = vcmask 261120
  %v173 = vsel %vm171, %v140, 0
  %v176 = vsel %vm171, %v141, 0
  %v179 = vsel %vm171, %v142, 0
  %v182 = vsel %vm171, %v143, 0
  %v185 = vsel %vm171, %v144, 0
  %v188 = vsel %vm171, %v145, 0
  %v191 = vsel %vm171, %v146, 0
  %v194 = vsel %vm171, %v147, 0
  %v197 = vsel %vm171, %v148, 0
  %v200 = vsel %vm171, %v149, 0
  %v203 = vsel %vm171, %v150, 0
  %v206 = vsel %vm171, %v151, 0
  %v209 = vsel %vm171, %v152, 0
  %v212 = vsel %vm171, %v153, 0
  %v215 = vsel %vm171, %v154, 0
  %v218 = vsel %vm171, %v155, 0
  %v221 = vsel %vm171, %v156, 0
  %v224 = vsel %vm171, %v157, 0
  %v227 = vsel %vm171, %v158, 0
  %229 = vmatprep.subr.bf16.mxu0 0
  %230 = vmatpush1.bf16.msra.mxu0 %v167
  %231 = vmatprep.subr.bf16.mxu0 0
  %232 = vmatpush1.bf16.msra.mxu0 %v168
  %233 = vmatprep.subr.bf16.mxu0 0
  %234 = vmatpush1.bf16.msra.mxu0 0
  %235 = vmatprep.subr.bf16.mxu0 0
  %236 = vmatpush1.bf16.msra.mxu0 0
  %237 = vmatprep.subr.bf16.mxu0 0
  %238 = vmatpush1.bf16.msra.mxu0 0
  %239 = vmatprep.subr.bf16.mxu0 0
  %240 = vmatpush1.bf16.msra.mxu0 0
  %241 = vmatprep.subr.bf16.mxu0 0
  %242 = vmatpush1.bf16.msra.mxu0 0
  %243 = vmatprep.subr.bf16.mxu0 0
  %244 = vmatpush1.bf16.msra.mxu0 0
  %245 = vmatprep.subr.bf16.mxu0 0
  %246 = vmatpush1.bf16.msra.mxu0 0
  %247 = vmatprep.subr.bf16.mxu0 0
  %248 = vmatpush1.bf16.msra.mxu0 0
  %249 = vmatprep.subr.bf16.mxu0 0
  %250 = vmatpush1.bf16.msra.mxu0 0
  %251 = vmatprep.subr.bf16.mxu0 0
  %252 = vmatpush1.bf16.msra.mxu0 0
  %253 = vmatprep.subr.bf16.mxu0 0
  %254 = vmatpush1.bf16.msra.mxu0 0
  %255 = vmatprep.subr.bf16.mxu0 0
  %256 = vmatpush1.bf16.msra.mxu0 0
  %257 = vmatprep.subr.bf16.mxu0 0
  %258 = vmatpush1.bf16.msra.mxu0 0
  %259 = vmatprep.subr.bf16.mxu0 0
  %260 = vmatpush1.bf16.msra.mxu0 0
  %261 = vmatprep.mubr.bf16.mxu0 0
  %262 = vmatmul.mubr.bf16.gmra.mrb[0].mxu0 %v173
  %v263 = vpop.f32.mrb[0].mxu0
  %v264 = vadd.f32 %v62, %v263
  %v265 = vpop.f32.mrb[0].mxu0
  %v266 = vpop.f32.mrb[0].mxu0
  %v267 = vadd.f32 %v62, %v266
  %v268 = vpop.f32.mrb[0].mxu0
  %269 = vmatprep.mubr.bf16.mxu0 0
  %270 = vmatmul.mubr.bf16.gmra.mrb[0].mxu0 %v176
  %v271 = vpop.f32.mrb[0].mxu0
  %v272 = vadd.f32 %v62, %v271
  %v273 = vpop.f32.mrb[0].mxu0
  %v274 = vpop.f32.mrb[0].mxu0
  %v275 = vadd.f32 %v62, %v274
  %v276 = vpop.f32.mrb[0].mxu0
  %277 = vmatprep.mubr.bf16.mxu0 0
  %278 = vmatmul.mubr.bf16.gmra.mrb[0].mxu0 %v179
  %v279 = vpop.f32.mrb[0].mxu0
  %v280 = vadd.f32 %v62, %v279
  %v281 = vpop.f32.mrb[0].mxu0
  %v282 = vpop.f32.mrb[0].mxu0
  %v283 = vadd.f32 %v62, %v282
  %v284 = vpop.f32.mrb[0].mxu0
  %285 = vmatprep.mubr.bf16.mxu0 0
  %286 = vmatmul.mubr.bf16.gmra.mrb[0].mxu0 %v182
  %v287 = vpop.f32.mrb[0].mxu0
  %v288 = vadd.f32 %v62, %v287
  %v289 = vpop.f32.mrb[0].mxu0
  %v290 = vpop.f32.mrb[0].mxu0
  %v291 = vadd.f32 %v62, %v290
  %v292 = vpop.f32.mrb[0].mxu0
  %293 = vmatprep.mubr.bf16.mxu0 0
  %294 = vmatmul.mubr.bf16.gmra.mrb[0].mxu0 %v185
  %v295 = vpop.f32.mrb[0].mxu0
  %v296 = vadd.f32 %v62, %v295
  %v297 = vpop.f32.mrb[0].mxu0
  %v298 = vpop.f32.mrb[0].mxu0
  %v299 = vadd.f32 %v62, %v298
  %v300 = vpop.f32.mrb[0].mxu0
  %301 = vmatprep.mubr.bf16.mxu0 0
  %302 = vmatmul.mubr.bf16.gmra.mrb[0].mxu0 %v188
  %v303 = vpop.f32.mrb[0].mxu0
  %v304 = vadd.f32 %v62, %v303
  %v305 = vpop.f32.mrb[0].mxu0
  %v306 = vpop.f32.mrb[0].mxu0
  %v307 = vadd.f32 %v62, %v306
  %v308 = vpop.f32.mrb[0].mxu0
  %309 = vmatprep.mubr.bf16.mxu0 0
  %310 = vmatmul.mubr.bf16.gmra.mrb[0].mxu0 %v191
  %v311 = vpop.f32.mrb[0].mxu0
  %v312 = vadd.f32 %v62, %v311
  %v313 = vpop.f32.mrb[0].mxu0
  %v314 = vpop.f32.mrb[0].mxu0
  %v315 = vadd.f32 %v62, %v314
  %v316 = vpop.f32.mrb[0].mxu0
  %317 = vmatprep.mubr.bf16.mxu0 0
  %318 = vmatmul.mubr.bf16.gmra.mrb[0].mxu0 %v194
  %v319 = vpop.f32.mrb[0].mxu0
  %v320 = vadd.f32 %v62, %v319
  %v321 = vpop.f32.mrb[0].mxu0
  %v322 = vpop.f32.mrb[0].mxu0
  %v323 = vadd.f32 %v62, %v322
  %v324 = vpop.f32.mrb[0].mxu0
  %325 = vmatprep.mubr.bf16.mxu0 0
  %326 = vmatmul.mubr.bf16.gmra.mrb[0].mxu0 %v197
  %v327 = vpop.f32.mrb[0].mxu0
  %v328 = vadd.f32 %v62, %v327
  %v329 = vpop.f32.mrb[0].mxu0
  %v330 = vpop.f32.mrb[0].mxu0
  %v331 = vadd.f32 %v62, %v330
  %v332 = vpop.f32.mrb[0].mxu0
  %333 = vmatprep.mubr.bf16.mxu0 0
  %334 = vmatmul.mubr.bf16.gmra.mrb[0].mxu0 %v200
  %v335 = vpop.f32.mrb[0].mxu0
  %v336 = vadd.f32 %v62, %v335
  %v337 = vpop.f32.mrb[0].mxu0
  %v338 = vpop.f32.mrb[0].mxu0
  %v339 = vadd.f32 %v62, %v338
  %v340 = vpop.f32.mrb[0].mxu0
  %341 = vmatprep.mubr.bf16.mxu0 0
  %342 = vmatmul.mubr.bf16.gmra.mrb[0].mxu0 %v203
  %v343 = vpop.f32.mrb[0].mxu0
  %v344 = vadd.f32 %v62, %v343
  %v345 = vpop.f32.mrb[0].mxu0
  %v346 = vpop.f32.mrb[0].mxu0
  %v347 = vadd.f32 %v62, %v346
  %v348 = vpop.f32.mrb[0].mxu0
  %349 = vmatprep.mubr.bf16.mxu0 0
  %350 = vmatmul.mubr.bf16.gmra.mrb[0].mxu0 %v206
  %v351 = vpop.f32.mrb[0].mxu0
  %v352 = vadd.f32 %v62, %v351
  %v353 = vpop.f32.mrb[0].mxu0
  %v354 = vpop.f32.mrb[0].mxu0
  %v355 = vadd.f32 %v62, %v354
  %v356 = vpop.f32.mrb[0].mxu0
  %357 = vmatprep.mubr.bf16.mxu0 0
  %358 = vmatmul.mubr.bf16.gmra.mrb[0].mxu0 %v209
  %v359 = vpop.f32.mrb[0].mxu0
  %v360 = vadd.f32 %v62, %v359
  %v361 = vpop.f32.mrb[0].mxu0
  %v362 = vpop.f32.mrb[0].mxu0
  %v363 = vadd.f32 %v62, %v362
  %v364 = vpop.f32.mrb[0].mxu0
  %365 = vmatprep.mubr.bf16.mxu0 0
  %366 = vmatmul.mubr.bf16.gmra.mrb[0].mxu0 %v212
  %v367 = vpop.f32.mrb[0].mxu0
  %v368 = vadd.f32 %v62, %v367
  %v369 = vpop.f32.mrb[0].mxu0
  %v370 = vpop.f32.mrb[0].mxu0
  %v371 = vadd.f32 %v62, %v370
  %v372 = vpop.f32.mrb[0].mxu0
  %373 = vmatprep.mubr.bf16.mxu0 0
  %374 = vmatmul.mubr.bf16.gmra.mrb[0].mxu0 %v215
  %v375 = vpop.f32.mrb[0].mxu0
  %v376 = vadd.f32 %v62, %v375
  %v377 = vpop.f32.mrb[0].mxu0
  %v378 = vpop.f32.mrb[0].mxu0
  %v379 = vadd.f32 %v62, %v378
  %v380 = vpop.f32.mrb[0].mxu0
  %381 = vmatprep.mubr.bf16.mxu0 0
  %382 = vmatmul.mubr.bf16.gmra.mrb[0].mxu0 %v218
  %v383 = vpop.f32.mrb[0].mxu0
  %v384 = vadd.f32 %v62, %v383
  %v385 = vpop.f32.mrb[0].mxu0
  %v386 = vpop.f32.mrb[0].mxu0
  %v387 = vadd.f32 %v62, %v386
  %v388 = vpop.f32.mrb[0].mxu0
  %389 = vmatprep.mubr.bf16.mxu0 0
  %390 = vmatmul.mubr.bf16.gmra.mrb[0].mxu0 %v221
  %v391 = vpop.f32.mrb[0].mxu0
  %v392 = vadd.f32 %v62, %v391
  %v393 = vpop.f32.mrb[0].mxu0
  %v394 = vpop.f32.mrb[0].mxu0
  %v395 = vadd.f32 %v62, %v394
  %v396 = vpop.f32.mrb[0].mxu0
  %397 = vmatprep.mubr.bf16.mxu0 0
  %398 = vmatmul.mubr.bf16.gmra.mrb[0].mxu0 %v224
  %v399 = vpop.f32.mrb[0].mxu0
  %v400 = vadd.f32 %v62, %v399
  %v401 = vpop.f32.mrb[0].mxu0
  %v402 = vpop.f32.mrb[0].mxu0
  %v403 = vadd.f32 %v62, %v402
  %v404 = vpop.f32.mrb[0].mxu0
  %405 = vmatprep.mubr.bf16.mxu0 0
  %406 = vmatmul.mubr.bf16.gmra.mrb[0].mxu0 %v227
  %v407 = vpop.f32.mrb[0].mxu0
  %v408 = vadd.f32 %v62, %v407
  %v409 = vpop.f32.mrb[0].mxu0
  %v410 = vpop.f32.mrb[0].mxu0
  %v411 = vadd.f32 %v62, %v410
  %v412 = vpop.f32.mrb[0].mxu0
  %413 = vdwg.mxu0
  %v414 = vmax.f32 %v264, 0.0
  %v415 = vmax.f32 %v267, 0.0
  %v416 = vmax.f32 %v272, 0.0
  %v417 = vmax.f32 %v275, 0.0
  %v418 = vmax.f32 %v280, 0.0
  %v419 = vmax.f32 %v283, 0.0
  %v420 = vmax.f32 %v288, 0.0
  %v421 = vmax.f32 %v291, 0.0
  %v422 = vmax.f32 %v296, 0.0
  %v423 = vmax.f32 %v299, 0.0
  %v424 = vmax.f32 %v304, 0.0
  %v425 = vmax.f32 %v307, 0.0
  %v426 = vmax.f32 %v312, 0.0
  %v427 = vmax.f32 %v315, 0.0
  %v428 = vmax.f32 %v320, 0.0
  %v429 = vmax.f32 %v323, 0.0
  %v430 = vmax.f32 %v328, 0.0
  %v431 = vmax.f32 %v331, 0.0
  %v432 = vmax.f32 %v336, 0.0
  %v433 = vmax.f32 %v339, 0.0
  %v434 = vmax.f32 %v344, 0.0
  %v435 = vmax.f32 %v347, 0.0
  %v436 = vmax.f32 %v352, 0.0
  %v437 = vmax.f32 %v355, 0.0
  %v438 = vmax.f32 %v360, 0.0
  %v439 = vmax.f32 %v363, 0.0
  %v440 = vmax.f32 %v368, 0.0
  %v441 = vmax.f32 %v371, 0.0
  %v442 = vmax.f32 %v376, 0.0
  %v443 = vmax.f32 %v379, 0.0
  %v444 = vmax.f32 %v384, 0.0
  %v445 = vmax.f32 %v387, 0.0
  %v446 = vmax.f32 %v392, 0.0
  %v447 = vmax.f32 %v395, 0.0
  %v448 = vmax.f32 %v400, 0.0
  %v449 = vmax.f32 %v403, 0.0
  %v450 = vmax.f32 %v408, 0.0
  %v451 = vmax.f32 %v411, 0.0
  %vm452 = vcmask 523264
  %453 = vst.msk [vmem:[%s3] sm:$0xff] %vm452, %v414
  %454 = vst.msk [vmem:[%s3 + $0x8] sm:$0xff] %vm452, %v415
  %455 = vst.msk [vmem:[%s3 + $0x10] sm:$0xff] %vm452, %v416
  %456 = vst.msk [vmem:[%s3 + $0x18] sm:$0xff] %vm452, %v417
  %457 = vst.msk [vmem:[%s3 + $0x20] sm:$0xff] %vm452, %v418
  %458 = vst.msk [vmem:[%s3 + $0x28] sm:$0xff] %vm452, %v419
  %459 = vst.msk [vmem:[%s3 + $0x30] sm:$0xff] %vm452, %v420
  %460 = vst.msk [vmem:[%s3 + $0x38] sm:$0xff] %vm452, %v421
  %461 = vst.msk [vmem:[%s3 + $0x40] sm:$0xff] %vm452, %v422
  %462 = vst.msk [vmem:[%s3 + $0x48] sm:$0xff] %vm452, %v423
  %463 = vst.msk [vmem:[%s3 + $0x50] sm:$0xff] %vm452, %v424
  %464 = vst.msk [vmem:[%s3 + $0x58] sm:$0xff] %vm452, %v425
  %465 = vst.msk [vmem:[%s3 + $0x60] sm:$0xff] %vm452, %v426
  %466 = vst.msk [vmem:[%s3 + $0x68] sm:$0xff] %vm452, %v427
  %467 = vst.msk [vmem:[%s3 + $0x70] sm:$0xff] %vm452, %v428
  %468 = vst.msk [vmem:[%s3 + $0x78] sm:$0xff] %vm452, %v429
  %469 = vst.msk [vmem:[%s3 + $0x80] sm:$0xff] %vm452, %v430
  %470 = vst.msk [vmem:[%s3 + $0x88] sm:$0xff] %vm452, %v431
  %471 = vst.msk [vmem:[%s3 + $0x90] sm:$0xff] %vm452, %v432
  %472 = vst.msk [vmem:[%s3 + $0x98] sm:$0xff] %vm452, %v433
  %473 = vst.msk [vmem:[%s3 + $0xa0] sm:$0xff] %vm452, %v434
  %474 = vst.msk [vmem:[%s3 + $0xa8] sm:$0xff] %vm452, %v435
  %475 = vst.msk [vmem:[%s3 + $0xb0] sm:$0xff] %vm452, %v436
  %476 = vst.msk [vmem:[%s3 + $0xb8] sm:$0xff] %vm452, %v437
  %477 = vst.msk [vmem:[%s3 + $0xc0] sm:$0xff] %vm452, %v438
  %478 = vst.msk [vmem:[%s3 + $0xc8] sm:$0xff] %vm452, %v439
  %479 = vst.msk [vmem:[%s3 + $0xd0] sm:$0xff] %vm452, %v440
  %480 = vst.msk [vmem:[%s3 + $0xd8] sm:$0xff] %vm452, %v441
  %481 = vst.msk [vmem:[%s3 + $0xe0] sm:$0xff] %vm452, %v442
  %482 = vst.msk [vmem:[%s3 + $0xe8] sm:$0xff] %vm452, %v443
  %483 = vst.msk [vmem:[%s3 + $0xf0] sm:$0xff] %vm452, %v444
  %484 = vst.msk [vmem:[%s3 + $0xf8] sm:$0xff] %vm452, %v445
  %485 = vst.msk [vmem:[%s3 + $0x100] sm:$0xff] %vm452, %v446
  %486 = vst.msk [vmem:[%s3 + $0x108] sm:$0xff] %vm452, %v447
  %487 = vst.msk [vmem:[%s3 + $0x110] sm:$0xff] %vm452, %v448
  %488 = vst.msk [vmem:[%s3 + $0x118] sm:$0xff] %vm452, %v449
  %489 = vst.msk [vmem:[%s3 + $0x120] sm:$0xff] %vm452, %v450
  %490 = vst.msk [vmem:[%s3 + $0x128] sm:$0xff] %vm452, %v451
  // Predicated region
  $region14: #{tpu_custom_call.1} parent=0 // pred_check
    _
  $region15: #{tpu_custom_call.1} parent=0 // pred_check_branch
    %492 = sbr.rel (0) target = $region17
  $region16: #{tpu_custom_call.1} parent=0 // pred_region
    _
  $region17: #{tpu_custom_call.1} parent=0 // pred_fallthru
    _
  // Predicated region
  $region18: #{tpu_custom_call.1} parent=0 // pred_check
    _
  $region19: #{tpu_custom_call.1} parent=0 // pred_check_branch
    %494 = sbr.rel (0) target = $region21
  $region20: #{tpu_custom_call.1} parent=0 // pred_region
    _
  $region21: #{tpu_custom_call.1} parent=0 // pred_fallthru
    _

</llo_original>
